<compile_context>
chip_gen: v5e
topology: v5e:2x2
jax: 0.10.0
libtpu: 0.0.40
codegen_flags: <defaults>
</compile_context>

<pallas_src>
import jax
import jax.numpy as jnp
from jax.experimental import pallas as pl
from jax.experimental.pallas import tpu as pltpu

LN_EPS = 1e-5
_BIAS_LANES = 128  # one (8,128) VMEM tile holds every packed bias row


def _normalize(x):
    # LayerNorm statistics only (the affine part is folded into the next linear).
    mean = jnp.mean(x, axis=-1, keepdims=True)
    xc = x - mean
    var = jnp.mean(xc * xc, axis=-1, keepdims=True)
    return xc * jax.lax.rsqrt(var + LN_EPS)


def _make_kernel(batch, inp_emb, emb1, emb2):
    def kernel(x_ref, we_ref, w1_ref, w2_ref, wh_ref, bias_ref, out_ref):
        # Unpack the single packed-bias slab (all lane slices within one vreg).
        bias = bias_ref[...]
        be = bias[0:1, :inp_emb]
        b1 = bias[1:2, :emb1]
        b2 = bias[2:3, :emb2]
        bh = bias[3:4, :3]

        # Weight-shared towers, run once on the pre-stacked [2B, feat] batch.
        x = x_ref[...]

        emb = jnp.dot(x, we_ref[...], preferred_element_type=jnp.float32) + be
        emb = _normalize(emb)                                               # ln1 (affine folded)
        h1 = jnp.maximum(
            jnp.dot(emb, w1_ref[...], preferred_element_type=jnp.float32) + b1, 0.0)
        h1 = _normalize(h1)                                                 # ln2 (affine folded)
        h2 = jnp.maximum(
            jnp.dot(h1, w2_ref[...], preferred_element_type=jnp.float32) + b2, 0.0)

        # Fused score/pred head: col 0 = score, cols 1:3 = pred.
        head = jnp.dot(h2, wh_ref[...], preferred_element_type=jnp.float32) + bh  # [2B, 3]
        score = head[:, 0:1]
        pred = head[:, 1:3]

        rank = jax.nn.sigmoid(score[:batch] - score[batch:])                # [B, 1]
        out_ref[...] = jnp.concatenate(
            [rank, pred[:batch], pred[batch:], jnp.zeros((batch, 3), jnp.float32)],
            axis=-1,
        )                                                                   # [B, 8]

    return kernel


@jax.jit
def multitask_mlp_forward(x1, x2, params):
    """Returns (rank_score [B,1], x1_pred [B,2], x2_pred [B,2])."""
    f32 = jnp.float32
    B, feat = x1.shape
    inp_emb = params["we"].shape[1]
    emb1 = params["w1"].shape[1]
    emb2 = params["w2"].shape[1]
    assert max(inp_emb, emb1, emb2, 3) <= _BIAS_LANES, "bias slab assumes dims <= 128"

    # --- one-time parameter preprocessing (outside the kernel, exact math) -----
    # Fold LayerNorm gamma/beta into the following linear.
    w1 = params["g1"].reshape(-1, 1) * params["w1"]
    b1 = params["b1"] + params["bt1"] @ params["w1"]
    w2 = params["g2"].reshape(-1, 1) * params["w2"]
    b2 = params["b2"] + params["bt2"] @ params["w2"]
    # Fuse scorelayer + pred into one [emb2, 3] head.
    wh = jnp.concatenate([params["ws"], params["ws"] @ params["wp"]], axis=1)
    bh = jnp.concatenate([params["bs"], params["bs"] @ params["wp"] + params["bp"]], axis=1)

    # Pack every bias vector into one (8, 128) tile -> a single entry DMA.
    bias = jnp.zeros((8, _BIAS_LANES), f32)
    bias = bias.at[0, :inp_emb].set(params["be"][0].astype(f32))
    bias = bias.at[1, :emb1].set(b1[0].astype(f32))
    bias = bias.at[2, :emb2].set(b2[0].astype(f32))
    bias = bias.at[3, :3].set(bh[0].astype(f32))

    # Stack the two inputs once in the wrapper (trivial XLA concat) so the kernel
    # receives a single [2B, feat] slab: one input DMA, no in-kernel VMEM copy.
    x = jnp.concatenate([x1.astype(f32), x2.astype(f32)], axis=0)

    kernel = _make_kernel(B, inp_emb, emb1, emb2)
    vmem = pl.BlockSpec(memory_space=pltpu.MemorySpace.VMEM)

    flops = 2 * (2 * B) * (feat * inp_emb + inp_emb * emb1 + emb1 * emb2 + emb2 * 3)
    bytes_accessed = 4 * (
        2 * B * feat + feat * inp_emb + inp_emb * emb1 + emb1 * emb2 + emb2 * 3
        + 8 * _BIAS_LANES + B * 8
    )

    out = pl.pallas_call(
        kernel,
        out_shape=jax.ShapeDtypeStruct((B, 8), f32),
        in_specs=[vmem] * 6,
        out_specs=vmem,
        cost_estimate=pl.CostEstimate(
            flops=flops,
            transcendentals=2 * (2 * B) + B,   # 2x rsqrt per row + sigmoid
            bytes_accessed=bytes_accessed,
        ),
    )(x, params["we"].astype(f32), w1.astype(f32), w2.astype(f32),
      wh.astype(f32), bias)

    return out[:, 0:1], out[:, 1:3], out[:, 3:5]


def init_params(key, feat_dim, inp_emb, emb_dim1, emb_dim2):
    ks = jax.random.split(key, 14)
    f32 = jnp.float32

    def lin(kw, kb, din, dout, scale=0.1):
        w = (scale * jax.random.normal(kw, (din, dout))).astype(f32)
        b = (scale * jax.random.normal(kb, (1, dout))).astype(f32)
        return w, b

    we, be = lin(ks[0], ks[1], feat_dim, inp_emb)
    w1, b1 = lin(ks[2], ks[3], inp_emb, emb_dim1)
    w2, b2 = lin(ks[4], ks[5], emb_dim1, emb_dim2)
    ws, bs = lin(ks[6], ks[7], emb_dim2, 1)
    wp, bp = lin(ks[8], ks[9], 1, 2)
    # Non-trivial LayerNorm affine so the gamma/beta-folding path is actually exercised.
    g1 = (1.0 + 0.1 * jax.random.normal(ks[10], (inp_emb,))).astype(f32)
    bt1 = (0.1 * jax.random.normal(ks[11], (inp_emb,))).astype(f32)
    g2 = (1.0 + 0.1 * jax.random.normal(ks[12], (emb_dim1,))).astype(f32)
    bt2 = (0.1 * jax.random.normal(ks[13], (emb_dim1,))).astype(f32)
    return {
        "we": we, "be": be,
        "g1": g1, "bt1": bt1.reshape(1, -1),
        "w1": w1, "b1": b1,
        "g2": g2, "bt2": bt2.reshape(1, -1),
        "w2": w2, "b2": b2,
        "ws": ws, "bs": bs,
        "wp": wp, "bp": bp,
    }


def reference_forward(x1, x2, p):
    """Independent pure-JAX mirror of the PyTorch forward (no folding, no fusion)."""
    def ln(x, g, b):
        m = jnp.mean(x, axis=-1, keepdims=True)
        v = jnp.mean((x - m) ** 2, axis=-1, keepdims=True)
        return (x - m) / jnp.sqrt(v + LN_EPS) * g + b

    def tower(x):
        e = ln(x @ p["we"] + p["be"], p["g1"], p["bt1"])
        h1 = ln(jnp.maximum(e @ p["w1"] + p["b1"], 0.0), p["g2"], p["bt2"])
        h2 = jnp.maximum(h1 @ p["w2"] + p["b2"], 0.0)
        s = h2 @ p["ws"] + p["bs"]
        return s, s @ p["wp"] + p["bp"]

    s1, p1 = tower(x1)
    s2, p2 = tower(x2)
    return jax.nn.sigmoid(s1 - s2), p1, p2


if __name__ == "__main__":
    # Small shapes consistent with the module: batch=8 patients, feat_dim=32.
    B, FEAT, INP_EMB, EMB1, EMB2 = 8, 32, 32, 64, 32

    key = jax.random.PRNGKey(0)
    kx1, kx2, kp = jax.random.split(key, 3)
    x1 = jax.random.normal(kx1, (B, FEAT), dtype=jnp.float32)
    x2 = jax.random.normal(kx2, (B, FEAT), dtype=jnp.float32)
    params = init_params(kp, FEAT, INP_EMB, EMB1, EMB2)

    rank_score, x1_pred, x2_pred = multitask_mlp_forward(x1, x2, params)
    jax.block_until_ready((rank_score, x1_pred, x2_pred))

    # Correctness check vs. an independent pure-JAX reference of the PyTorch forward.
    r_ref, p1_ref, p2_ref = reference_forward(x1, x2, params)
    assert rank_score.shape == (B, 1) and x1_pred.shape == (B, 2) and x2_pred.shape == (B, 2)
    assert jnp.allclose(rank_score, r_ref, atol=1e-4, rtol=1e-4), "rank mismatch"
    assert jnp.allclose(x1_pred, p1_ref, atol=1e-4, rtol=1e-4), "pred1 mismatch"
    assert jnp.allclose(x2_pred, p2_ref, atol=1e-4, rtol=1e-4), "pred2 mismatch"

    print("KERNEL_OK")
</pallas_src>

<mosaic_0001>
module attributes {stable_mosaic.version = 11 : i64} {
  func.func @kernel(%arg0: memref<16x32xf32, #tpu.memory_space<vmem>>, %arg1: memref<32x32xf32, #tpu.memory_space<vmem>>, %arg2: memref<32x64xf32, #tpu.memory_space<vmem>>, %arg3: memref<64x32xf32, #tpu.memory_space<vmem>>, %arg4: memref<32x3xf32, #tpu.memory_space<vmem>>, %arg5: memref<8x128xf32, #tpu.memory_space<vmem>>, %arg6: memref<8x8xf32, #tpu.memory_space<vmem>>) attributes {dimension_semantics = [], scalar_prefetch = 0 : i64, scratch_operands = 0 : i64, tpu.core_type = #tpu.core_type<tc>} {
    %c0 = arith.constant 0 : index
    %c0_0 = arith.constant 0 : index
    %0 = vector.load %arg5[%c0, %c0_0] : memref<8x128xf32, #tpu.memory_space<vmem>>, vector<8x128xf32>
    %1 = vector.extract_strided_slice %0 {offsets = [0, 0], sizes = [1, 32], strides = [1, 1]} : vector<8x128xf32> to vector<1x32xf32>
    %2 = vector.extract_strided_slice %0 {offsets = [1, 0], sizes = [1, 64], strides = [1, 1]} : vector<8x128xf32> to vector<1x64xf32>
    %3 = vector.extract_strided_slice %0 {offsets = [2, 0], sizes = [1, 32], strides = [1, 1]} : vector<8x128xf32> to vector<1x32xf32>
    %4 = vector.extract_strided_slice %0 {offsets = [3, 0], sizes = [1, 3], strides = [1, 1]} : vector<8x128xf32> to vector<1x3xf32>
    %c0_1 = arith.constant 0 : index
    %c0_2 = arith.constant 0 : index
    %5 = vector.load %arg0[%c0_1, %c0_2] : memref<16x32xf32, #tpu.memory_space<vmem>>, vector<16x32xf32>
    %c0_3 = arith.constant 0 : index
    %c0_4 = arith.constant 0 : index
    %6 = vector.load %arg1[%c0_3, %c0_4] : memref<32x32xf32, #tpu.memory_space<vmem>>, vector<32x32xf32>
    %cst = arith.constant dense<0.000000e+00> : vector<16x32xf32>
    %7 = tpu.matmul %5, %6, %cst {dimension_numbers = #tpu.dot_dimension_numbers<[1], [0], [0], [1], [0, 0, 1, 1], [], []>} : vector<16x32xf32>, vector<32x32xf32>, vector<16x32xf32> -> vector<16x32xf32>
    %8 = vector.broadcast %1 : vector<1x32xf32> to vector<16x32xf32>
    %9 = arith.addf %7, %8 : vector<16x32xf32>
    %cst_5 = arith.constant dense<0.000000e+00> : vector<16xf32>
    %10 = vector.multi_reduction <add>, %9, %cst_5 [1] : vector<16x32xf32> to vector<16xf32>
    %11 = vector.shape_cast %10 : vector<16xf32> to vector<16x1xf32>
    %cst_6 = arith.constant 3.200000e+01 : f32
    %12 = vector.broadcast %cst_6 : f32 to vector<16x1xf32>
    %13 = arith.divf %11, %12 : vector<16x1xf32>
    %14 = vector.broadcast %13 : vector<16x1xf32> to vector<16x32xf32>
    %15 = arith.subf %9, %14 : vector<16x32xf32>
    %16 = arith.mulf %15, %15 : vector<16x32xf32>
    %cst_7 = arith.constant dense<0.000000e+00> : vector<16xf32>
    %17 = vector.multi_reduction <add>, %16, %cst_7 [1] : vector<16x32xf32> to vector<16xf32>
    %18 = vector.shape_cast %17 : vector<16xf32> to vector<16x1xf32>
    %cst_8 = arith.constant 3.200000e+01 : f32
    %19 = vector.broadcast %cst_8 : f32 to vector<16x1xf32>
    %20 = arith.divf %18, %19 : vector<16x1xf32>
    %cst_9 = arith.constant 9.99999974E-6 : f32
    %21 = vector.broadcast %cst_9 : f32 to vector<16x1xf32>
    %22 = arith.addf %20, %21 : vector<16x1xf32>
    %23 = math.rsqrt %22 : vector<16x1xf32>
    %24 = vector.broadcast %23 : vector<16x1xf32> to vector<16x32xf32>
    %25 = arith.mulf %15, %24 : vector<16x32xf32>
    %c0_10 = arith.constant 0 : index
    %c0_11 = arith.constant 0 : index
    %26 = vector.load %arg2[%c0_10, %c0_11] : memref<32x64xf32, #tpu.memory_space<vmem>>, vector<32x64xf32>
    %cst_12 = arith.constant dense<0.000000e+00> : vector<16x64xf32>
    %27 = tpu.matmul %25, %26, %cst_12 {dimension_numbers = #tpu.dot_dimension_numbers<[1], [0], [0], [1], [0, 0, 1, 1], [], []>} : vector<16x32xf32>, vector<32x64xf32>, vector<16x64xf32> -> vector<16x64xf32>
    %28 = vector.broadcast %2 : vector<1x64xf32> to vector<16x64xf32>
    %29 = arith.addf %27, %28 : vector<16x64xf32>
    %cst_13 = arith.constant 0.000000e+00 : f32
    %30 = vector.broadcast %cst_13 : f32 to vector<16x64xf32>
    %31 = arith.maximumf %29, %30 : vector<16x64xf32>
    %cst_14 = arith.constant dense<0.000000e+00> : vector<16xf32>
    %32 = vector.multi_reduction <add>, %31, %cst_14 [1] : vector<16x64xf32> to vector<16xf32>
    %33 = vector.shape_cast %32 : vector<16xf32> to vector<16x1xf32>
    %cst_15 = arith.constant 6.400000e+01 : f32
    %34 = vector.broadcast %cst_15 : f32 to vector<16x1xf32>
    %35 = arith.divf %33, %34 : vector<16x1xf32>
    %36 = vector.broadcast %35 : vector<16x1xf32> to vector<16x64xf32>
    %37 = arith.subf %31, %36 : vector<16x64xf32>
    %38 = arith.mulf %37, %37 : vector<16x64xf32>
    %cst_16 = arith.constant dense<0.000000e+00> : vector<16xf32>
    %39 = vector.multi_reduction <add>, %38, %cst_16 [1] : vector<16x64xf32> to vector<16xf32>
    %40 = vector.shape_cast %39 : vector<16xf32> to vector<16x1xf32>
    %cst_17 = arith.constant 6.400000e+01 : f32
    %41 = vector.broadcast %cst_17 : f32 to vector<16x1xf32>
    %42 = arith.divf %40, %41 : vector<16x1xf32>
    %cst_18 = arith.constant 9.99999974E-6 : f32
    %43 = vector.broadcast %cst_18 : f32 to vector<16x1xf32>
    %44 = arith.addf %42, %43 : vector<16x1xf32>
    %45 = math.rsqrt %44 : vector<16x1xf32>
    %46 = vector.broadcast %45 : vector<16x1xf32> to vector<16x64xf32>
    %47 = arith.mulf %37, %46 : vector<16x64xf32>
    %c0_19 = arith.constant 0 : index
    %c0_20 = arith.constant 0 : index
    %48 = vector.load %arg3[%c0_19, %c0_20] : memref<64x32xf32, #tpu.memory_space<vmem>>, vector<64x32xf32>
    %cst_21 = arith.constant dense<0.000000e+00> : vector<16x32xf32>
    %49 = tpu.matmul %47, %48, %cst_21 {dimension_numbers = #tpu.dot_dimension_numbers<[1], [0], [0], [1], [0, 0, 1, 1], [], []>} : vector<16x64xf32>, vector<64x32xf32>, vector<16x32xf32> -> vector<16x32xf32>
    %50 = vector.broadcast %3 : vector<1x32xf32> to vector<16x32xf32>
    %51 = arith.addf %49, %50 : vector<16x32xf32>
    %cst_22 = arith.constant 0.000000e+00 : f32
    %52 = vector.broadcast %cst_22 : f32 to vector<16x32xf32>
    %53 = arith.maximumf %51, %52 : vector<16x32xf32>
    %c0_23 = arith.constant 0 : index
    %c0_24 = arith.constant 0 : index
    %54 = vector.load %arg4[%c0_23, %c0_24] : memref<32x3xf32, #tpu.memory_space<vmem>>, vector<32x3xf32>
    %cst_25 = arith.constant dense<0.000000e+00> : vector<16x3xf32>
    %55 = tpu.matmul %53, %54, %cst_25 {dimension_numbers = #tpu.dot_dimension_numbers<[1], [0], [0], [1], [0, 0, 1, 1], [], []>} : vector<16x32xf32>, vector<32x3xf32>, vector<16x3xf32> -> vector<16x3xf32>
    %56 = vector.broadcast %4 : vector<1x3xf32> to vector<16x3xf32>
    %57 = arith.addf %55, %56 : vector<16x3xf32>
    %58 = vector.extract_strided_slice %57 {offsets = [0, 0], sizes = [16, 1], strides = [1, 1]} : vector<16x3xf32> to vector<16x1xf32>
    %59 = vector.extract_strided_slice %57 {offsets = [0, 1], sizes = [16, 2], strides = [1, 1]} : vector<16x3xf32> to vector<16x2xf32>
    %60 = vector.extract_strided_slice %58 {offsets = [0, 0], sizes = [8, 1], strides = [1, 1]} : vector<16x1xf32> to vector<8x1xf32>
    %61 = vector.extract_strided_slice %58 {offsets = [8, 0], sizes = [8, 1], strides = [1, 1]} : vector<16x1xf32> to vector<8x1xf32>
    %62 = arith.subf %60, %61 : vector<8x1xf32>
    %63 = arith.negf %62 : vector<8x1xf32>
    %64 = math.exp %63 : vector<8x1xf32>
    %cst_26 = arith.constant 1.000000e+00 : f32
    %65 = vector.broadcast %cst_26 : f32 to vector<8x1xf32>
    %66 = arith.addf %65, %64 : vector<8x1xf32>
    %67 = arith.divf %65, %66 : vector<8x1xf32>
    %68 = vector.extract_strided_slice %59 {offsets = [0, 0], sizes = [8, 2], strides = [1, 1]} : vector<16x2xf32> to vector<8x2xf32>
    %69 = vector.extract_strided_slice %59 {offsets = [8, 0], sizes = [8, 2], strides = [1, 1]} : vector<16x2xf32> to vector<8x2xf32>
    %cst_27 = arith.constant 0.000000e+00 : f32
    %70 = vector.broadcast %cst_27 : f32 to vector<8x3xf32>
    %71 = tpu.concatenate %67, %68, %69, %70 in 1 : vector<8x1xf32>, vector<8x2xf32>, vector<8x2xf32>, vector<8x3xf32> -> vector<8x8xf32>
    %c0_28 = arith.constant 0 : index
    %c0_29 = arith.constant 0 : index
    %72 = vector.load %arg6[%c0_28, %c0_29] : memref<8x8xf32, #tpu.memory_space<vmem>>, vector<8x8xf32>
    tpu.vector_store %arg6[%c0_28, %c0_29], %71 {strides = array<i32>} : memref<8x8xf32, #tpu.memory_space<vmem>>, vector<8x8xf32>,
    return
  }
}

</mosaic_0001>

<llo_original>
// kernel: multitask_mlp_forward.1
$region0: #{multitask_mlp_forward.1}
  #allocation0 [shape = 'u32[]', space=smem, size = 0x4, offset = 0x4, fixed_abs, tag = 'smem constant byte address 0x4 - core index']
  #allocation1 [shape = 'u32[72,128]{1,0:T(1,128)}', space=vmem, size = 0x9000, scoped, tag = 'internal scratch']
  %s0 = inlined_call_operand.vmem [shape: f32[16,32], index: 0, kind: input, shape index: {}]
  %s1 = inlined_call_operand.vmem [shape: f32[32,32], index: 1, kind: input, shape index: {}]
  %s2 = inlined_call_operand.vmem [shape: f32[32,64], index: 2, kind: input, shape index: {}]
  %s3 = inlined_call_operand.vmem [shape: f32[64,32], index: 3, kind: input, shape index: {}]
  %s4 = inlined_call_operand.vmem [shape: f32[32,3], index: 4, kind: input, shape index: {}]
  %s5 = inlined_call_operand.vmem [shape: f32[8,128], index: 5, kind: input, shape index: {}]
  %s6 = inlined_call_operand.vmem [shape: f32[8,8], index: 6, kind: output, shape index: {}]
  %s7 = sld [smem:[#allocation0]]
  $region34: #{multitask_mlp_forward.1} parent=0
    _
  %s9 = ssub.s32 1, %s7
  %s10 = scalar_select 0, %s9, %s7
  // Predicated region
  $region2: #{multitask_mlp_forward.1} parent=0 // pred_check
    _
  $region3: #{multitask_mlp_forward.1} parent=0 // pred_check_branch
    %12 = sbr.rel (0) target = $region5
  $region4: #{multitask_mlp_forward.1} parent=0 // pred_region
    _
  $region5: #{multitask_mlp_forward.1} parent=0 // pred_fallthru
    _
  // Predicated region
  $region6: #{multitask_mlp_forward.1} parent=0 // pred_check
    _
  $region7: #{multitask_mlp_forward.1} parent=0 // pred_check_branch
    %14 = sbr.rel (0) target = $region9
  $region8: #{multitask_mlp_forward.1} parent=0 // pred_region
    _
  $region9: #{multitask_mlp_forward.1} parent=0 // pred_fallthru
    _
  // Predicated region
  $region10: #{multitask_mlp_forward.1} parent=0 // pred_check
    _
  $region11: #{multitask_mlp_forward.1} parent=0 // pred_check_branch
    %16 = sbr.rel (0) target = $region13
  $region12: #{multitask_mlp_forward.1} parent=0 // pred_region
    _
  $region13: #{multitask_mlp_forward.1} parent=0 // pred_fallthru
    _
  // Predicated region
  $region14: #{multitask_mlp_forward.1} parent=0 // pred_check
    _
  $region15: #{multitask_mlp_forward.1} parent=0 // pred_check_branch
    %18 = sbr.rel (0) target = $region17
  $region16: #{multitask_mlp_forward.1} parent=0 // pred_region
    _
  $region17: #{multitask_mlp_forward.1} parent=0 // pred_fallthru
    _
  // Predicated region
  $region18: #{multitask_mlp_forward.1} parent=0 // pred_check
    _
  $region19: #{multitask_mlp_forward.1} parent=0 // pred_check_branch
    %20 = sbr.rel (0) target = $region21
  $region20: #{multitask_mlp_forward.1} parent=0 // pred_region
    _
  $region21: #{multitask_mlp_forward.1} parent=0 // pred_fallthru
    _
  // Predicated region
  $region22: #{multitask_mlp_forward.1} parent=0 // pred_check
    _
  $region23: #{multitask_mlp_forward.1} parent=0 // pred_check_branch
    %22 = sbr.rel (0) target = $region25
  $region24: #{multitask_mlp_forward.1} parent=0 // pred_region
    _
  $region25: #{multitask_mlp_forward.1} parent=0 // pred_fallthru
    _
  %v23 = vld [vmem:[%s5] sm:$0xff]
  %v24 = vld [vmem:[%s0] sm:$0xff]
  %v25 = vld [vmem:[%s0 + $0x8] sm:$0xff]
  %v26 = vld [vmem:[%s1] sm:$0xff]
  %v27 = vld [vmem:[%s1 + $0x8] sm:$0xff]
  %v28 = vld [vmem:[%s1 + $0x10] sm:$0xff]
  %v29 = vld [vmem:[%s1 + $0x18] sm:$0xff]
  %v30 = vperm.slane %v23, 0
  %vm31 = vcmask 261120
  %v33 = vsel %vm31, %v24, 0
  %v36 = vsel %vm31, %v25, 0
  %38 = vmatpush.msra.mxu0 0.0
  %39 = vmatpush.msra.mxu0 0.0
  %40 = vmatpush.msra.mxu0 0.0
  %41 = vmatpush.msra.mxu0 0.0
  %42 = vmatpush.msra.mxu0 0.0
  %43 = vmatpush.msra.mxu0 0.0
  %44 = vmatpush.msra.mxu0 0.0
  %45 = vmatpush.msra.mxu0 0.0
  %46 = vmatpush.msra.mxu0 0.0
  %47 = vmatpush.msra.mxu0 0.0
  %48 = vmatpush.msra.mxu0 0.0
  %49 = vmatpush.msra.mxu0 0.0
  %50 = vmatpush.msra.mxu0 %v29
  %51 = vmatpush.msra.mxu0 %v28
  %52 = vmatpush.msra.mxu0 %v27
  %53 = vmatpush.msra.mxu0 %v26
  %54 = vmatmul.f32.gmra.mxu0 %v33
  %v55 = vpop.f32.mrf.mxu0
  %v56 = vadd.f32 %v30, %v55
  %57 = vmatmul.f32.gmra.mxu0 %v36
  %v58 = vpop.f32.mrf.mxu0
  %v59 = vadd.f32 %v30, %v58
  %60 = vdwg.mxu0
  %v61 = vsel %vm31, %v56, 0.0
  %62 = vadd.xlane.f32.xlu0 %v61
  %v63 = vpop.xlane.xlu0 %62
  %v64 = vsel %vm31, %v59, 0.0
  %65 = vadd.xlane.f32.xlu0 %v64
  %v66 = vpop.xlane.xlu0 %65
  %v67 = vrcp.pop 32.0
  %v68 = vmul.f32 32.0, %v67
  %v69 = vsub.f32 1.0, %v68
  %v70 = vmul.f32 %v67, %v69
  %v71 = vadd.f32 %v67, %v70
  %vm72 = vweird.f32 %v67
  %v73 = vsel %vm72, %v67, %v71
  %v74 = vmul.f32 %v63, %v73
  %v75 = vmul.f32 %v66, %v73
  %v76 = vsub.f32 %v56, %v74
  %v77 = vsub.f32 %v59, %v75
  %v78 = vmul.f32 %v76, %v76
  %v79 = vmul.f32 %v77, %v77
  %v80 = vsel %vm31, %v78, 0.0
  %81 = vadd.xlane.f32.xlu0 %v80
  %v82 = vpop.xlane.xlu0 %81
  %v83 = vsel %vm31, %v79, 0.0
  %84 = vadd.xlane.f32.xlu0 %v83
  %v85 = vpop.xlane.xlu0 %84
  %v86 = vmul.f32 %v82, %v73
  %v87 = vmul.f32 %v85, %v73
  %v88 = vadd.f32 %v86, 1e-05
  %v89 = vadd.f32 %v87, 1e-05
  %v90 = vrsqrt.pop %v88
  %v91 = vmul.f32 %v90, %v88
  %v92 = vmul.f32 %v91, %v90
  %v93 = vmul.f32 0.5, %v92
  %v94 = vsub.f32 1.5, %v93
  %v95 = vmul.f32 %v90, %v94
  %vm96 = vweird.f32 %v88
  %vm97 = vweird.f32 %v90
  %vm98 = vmor %vm96, %vm97
  %v99 = vsel %vm98, %v90, %v95
  %v100 = vrsqrt.pop %v89
  %v101 = vmul.f32 %v100, %v89
  %v102 = vmul.f32 %v101, %v100
  %v103 = vmul.f32 0.5, %v102
  %v104 = vsub.f32 1.5, %v103
  %v105 = vmul.f32 %v100, %v104
  %vm106 = vweird.f32 %v89
  %vm107 = vweird.f32 %v100
  %vm108 = vmor %vm106, %vm107
  %v109 = vsel %vm108, %v100, %v105
  %v110 = vmul.f32 %v76, %v99
  %v111 = vmul.f32 %v77, %v109
  %v112 = vld [vmem:[%s2] sm:$0xff]
  %v113 = vld [vmem:[%s2 + $0x8] sm:$0xff]
  %v114 = vld [vmem:[%s2 + $0x10] sm:$0xff]
  %v115 = vld [vmem:[%s2 + $0x18] sm:$0xff]
  %v116 = vperm.slane %v23, 1
  %v118 = vsel %vm31, %v110, 0
  %v121 = vsel %vm31, %v111, 0
  %123 = vmatpush.msra.mxu0 0.0
  %124 = vmatpush.msra.mxu0 0.0
  %125 = vmatpush.msra.mxu0 0.0
  %126 = vmatpush.msra.mxu0 0.0
  %127 = vmatpush.msra.mxu0 0.0
  %128 = vmatpush.msra.mxu0 0.0
  %129 = vmatpush.msra.mxu0 0.0
  %130 = vmatpush.msra.mxu0 0.0
  %131 = vmatpush.msra.mxu0 0.0
  %132 = vmatpush.msra.mxu0 0.0
  %133 = vmatpush.msra.mxu0 0.0
  %134 = vmatpush.msra.mxu0 0.0
  %135 = vmatpush.msra.mxu0 %v115
  %136 = vmatpush.msra.mxu0 %v114
  %137 = vmatpush.msra.mxu0 %v113
  %138 = vmatpush.msra.mxu0 %v112
  %139 = vmatmul.f32.gmra.mxu0 %v118
  %v140 = vpop.f32.mrf.mxu0
  %v141 = vadd.f32 %v116, %v140
  %142 = vmatmul.f32.gmra.mxu0 %v121
  %v143 = vpop.f32.mrf.mxu0
  %v144 = vadd.f32 %v116, %v143
  %145 = vdwg.mxu0
  %v146 = vmax.f32 %v141, 0.0
  %v147 = vmax.f32 %v144, 0.0
  %vm148 = vcmask 523264
  %v149 = vsel %vm148, %v146, 0.0
  %150 = vadd.xlane.f32.xlu0 %v149
  %v151 = vpop.xlane.xlu0 %150
  %v152 = vsel %vm148, %v147, 0.0
  %153 = vadd.xlane.f32.xlu0 %v152
  %v154 = vpop.xlane.xlu0 %153
  %v155 = vrcp.pop 64.0
  %v156 = vmul.f32 64.0, %v155
  %v157 = vsub.f32 1.0, %v156
  %v158 = vmul.f32 %v155, %v157
  %v159 = vadd.f32 %v155, %v158
  %vm160 = vweird.f32 %v155
  %v161 = vsel %vm160, %v155, %v159
  %v162 = vmul.f32 %v151, %v161
  %v163 = vmul.f32 %v154, %v161
  %v164 = vsub.f32 %v146, %v162
  %v165 = vsub.f32 %v147, %v163
  %v166 = vmul.f32 %v164, %v164
  %v167 = vmul.f32 %v165, %v165
  %v168 = vsel %vm148, %v166, 0.0
  %169 = vadd.xlane.f32.xlu0 %v168
  %v170 = vpop.xlane.xlu0 %169
  %v171 = vsel %vm148, %v167, 0.0
  %172 = vadd.xlane.f32.xlu0 %v171
  %v173 = vpop.xlane.xlu0 %172
  %v174 = vmul.f32 %v170, %v161
  %v175 = vmul.f32 %v173, %v161
  %v176 = vadd.f32 %v174, 1e-05
  %v177 = vadd.f32 %v175, 1e-05
  %v178 = vrsqrt.pop %v176
  %v179 = vmul.f32 %v178, %v176
  %v180 = vmul.f32 %v179, %v178
  %v181 = vmul.f32 0.5, %v180
  %v182 = vsub.f32 1.5, %v181
  %v183 = vmul.f32 %v178, %v182
  %vm184 = vweird.f32 %v176
  %vm185 = vweird.f32 %v178
  %vm186 = vmor %vm184, %vm185
  %v187 = vsel %vm186, %v178, %v183
  %v188 = vrsqrt.pop %v177
  %v189 = vmul.f32 %v188, %v177
  %v190 = vmul.f32 %v189, %v188
  %v191 = vmul.f32 0.5, %v190
  %v192 = vsub.f32 1.5, %v191
  %v193 = vmul.f32 %v188, %v192
  %vm194 = vweird.f32 %v177
  %vm195 = vweird.f32 %v188
  %vm196 = vmor %vm194, %vm195
  %v197 = vsel %vm196, %v188, %v193
  %v198 = vmul.f32 %v164, %v187
  %v199 = vmul.f32 %v165, %v197
  %v200 = vld [vmem:[%s3] sm:$0xff]
  %v201 = vld [vmem:[%s3 + $0x8] sm:$0xff]
  %v202 = vld [vmem:[%s3 + $0x10] sm:$0xff]
  %v203 = vld [vmem:[%s3 + $0x18] sm:$0xff]
  %v204 = vld [vmem:[%s3 + $0x20] sm:$0xff]
  %v205 = vld [vmem:[%s3 + $0x28] sm:$0xff]
  %v206 = vld [vmem:[%s3 + $0x30] sm:$0xff]
  %v207 = vld [vmem:[%s3 + $0x38] sm:$0xff]
  %v208 = vperm.slane %v23, 2
  %v210 = vsel %vm148, %v198, 0
  %v213 = vsel %vm148, %v199, 0
  %215 = vmatpush.msra.mxu0 0.0
  %216 = vmatpush.msra.mxu0 0.0
  %217 = vmatpush.msra.mxu0 0.0
  %218 = vmatpush.msra.mxu0 0.0
  %219 = vmatpush.msra.mxu0 0.0
  %220 = vmatpush.msra.mxu0 0.0
  %221 = vmatpush.msra.mxu0 0.0
  %222 = vmatpush.msra.mxu0 0.0
  %223 = vmatpush.msra.mxu0 %v207
  %224 = vmatpush.msra.mxu0 %v206
  %225 = vmatpush.msra.mxu0 %v205
  %226 = vmatpush.msra.mxu0 %v204
  %227 = vmatpush.msra.mxu0 %v203
  %228 = vmatpush.msra.mxu0 %v202
  %229 = vmatpush.msra.mxu0 %v201
  %230 = vmatpush.msra.mxu0 %v200
  %231 = vmatmul.f32.gmra.mxu0 %v210
  %v232 = vpop.f32.mrf.mxu0
  %v233 = vadd.f32 %v208, %v232
  %234 = vmatmul.f32.gmra.mxu0 %v213
  %v235 = vpop.f32.mrf.mxu0
  %v236 = vadd.f32 %v208, %v235
  %237 = vdwg.mxu0
  %v238 = vmax.f32 %v233, 0.0
  %v239 = vmax.f32 %v236, 0.0
  %v240 = vld [vmem:[%s4] sm:$0xff]
  %v241 = vld [vmem:[%s4 + $0x8] sm:$0xff]
  %v242 = vld [vmem:[%s4 + $0x10] sm:$0xff]
  %v243 = vld [vmem:[%s4 + $0x18] sm:$0xff]
  %v244 = vperm.slane %v23, 3
  %v246 = vsel %vm31, %v238, 0
  %v249 = vsel %vm31, %v239, 0
  %251 = vmatpush.msra.mxu0 0.0
  %252 = vmatpush.msra.mxu0 0.0
  %253 = vmatpush.msra.mxu0 0.0
  %254 = vmatpush.msra.mxu0 0.0
  %255 = vmatpush.msra.mxu0 0.0
  %256 = vmatpush.msra.mxu0 0.0
  %257 = vmatpush.msra.mxu0 0.0
  %258 = vmatpush.msra.mxu0 0.0
  %259 = vmatpush.msra.mxu0 0.0
  %260 = vmatpush.msra.mxu0 0.0
  %261 = vmatpush.msra.mxu0 0.0
  %262 = vmatpush.msra.mxu0 0.0
  %263 = vmatpush.msra.mxu0 %v243
  %264 = vmatpush.msra.mxu0 %v242
  %265 = vmatpush.msra.mxu0 %v241
  %266 = vmatpush.msra.mxu0 %v240
  %267 = vmatmul.f32.gmra.mxu0 %v246
  %v268 = vpop.f32.mrf.mxu0
  %v269 = vadd.f32 %v244, %v268
  %270 = vmatmul.f32.gmra.mxu0 %v249
  %v271 = vpop.f32.mrf.mxu0
  %v272 = vadd.f32 %v244, %v271
  %273 = vdwg.mxu0
  %v274 = vsub.f32 %v269, %v272
  %v275 = vxor.u32 %v274, 2147483648
  %v276 = vmul.f32 %v275, 1.442695
  %v277 = vpow.pop %v276
  %v278 = vadd.f32 %v277, 1.0
  %v279 = vrcp.pop %v278
  %v280 = vmul.f32 %v278, %v279
  %v281 = vsub.f32 1.0, %v280
  %v282 = vmul.f32 %v279, %v281
  %v283 = vadd.f32 %v279, %v282
  %vm284 = vweird.f32 %v278
  %vm285 = vweird.f32 %v279
  %vm286 = vmor %vm284, %vm285
  %v287 = vsel %vm286, %v279, %v283
  %v288 = vand.u32 2147483647, %v278
  %vm289 = vcmp.eq.f32.partialorder %v288, 8.507059e+37
  %v290 = vand.u32 %v278, 2147483648
  %v291 = vor.u32 1.1754944e-38, %v290
  %v292 = vsel %vm289, %v291, %v287
  %v293 = vmul.f32 1.0, %v292
  %295 = vrot.lane.b32.xlu0 %v272, 2
  %v296 = vpop.permute.xlu0 %295
  %vm298 = vcmask 7168
  %v299 = vsel %vm298, %v293, %v269
  %vm300 = vcmask 23552
  %v301 = vsel %vm300, %v299, %v296
  %vm302 = vcmask 39936
  %v303 = vsel %vm302, %v301, 0.0
  %vm304 = vcmask 64512
  %305 = vst.msk [vmem:[%s6] sm:$0xff] %vm304, %v303
  // Predicated region
  $region26: #{multitask_mlp_forward.1} parent=0 // pred_check
    _
  $region27: #{multitask_mlp_forward.1} parent=0 // pred_check_branch
    %307 = sbr.rel (0) target = $region29
  $region28: #{multitask_mlp_forward.1} parent=0 // pred_region
    _
  $region29: #{multitask_mlp_forward.1} parent=0 // pred_fallthru
    _
  // Predicated region
  $region30: #{multitask_mlp_forward.1} parent=0 // pred_check
    _
  $region31: #{multitask_mlp_forward.1} parent=0 // pred_check_branch
    %309 = sbr.rel (0) target = $region33
  $region32: #{multitask_mlp_forward.1} parent=0 // pred_region
    _
  $region33: #{multitask_mlp_forward.1} parent=0 // pred_fallthru
    _

</llo_original>
